<compile_context>
chip_gen: v7x
topology: tpu7x:2x2x1
jax: 0.10.0
libtpu: 0.0.40
codegen_flags: <defaults>
</compile_context>

<pallas_src>
import jax
import jax.numpy as jnp
from jax import lax
from jax.experimental import pallas as pl
from jax.experimental.pallas import tpu as pltpu


def _round_up(a: int, m: int) -> int:
    return ((a + m - 1) // m) * m


def _pairwise_dist_kernel(x_ref, y_ref, rx_ref, ry_ref, o_ref):
    # x_ref: (TM, D), y_ref: (TN, D), rx_ref: (TM, 1) f32, ry_ref: (1, TN) f32
    # Cross term on the MXU, contracting the shared last dim (no transpose).
    zz = lax.dot_general(
        x_ref[...],
        y_ref[...],
        dimension_numbers=(((1,), (1,)), ((), ())),
        preferred_element_type=jnp.float32,
    )  # (TM, TN) f32
    o_ref[...] = (rx_ref[...] + ry_ref[...] - 2.0 * zz).astype(o_ref.dtype)


def batch_pairwise_dist(x, y, *, tm: int = 256, tn: int = 512):
    """x: (B, Nx, D), y: (B, Ny, D)  ->  P: (B, Nx, Ny) float32."""
    B, Nx, D = x.shape
    By, Ny, Dy = y.shape
    assert B == By and D == Dy

    # Squared norms, computed once (f32) in the wrapper with lane-dense layouts.
    rx = jnp.sum(x.astype(jnp.float32) ** 2, axis=-1, keepdims=True)   # (B, Nx, 1)
    ry = jnp.sum(y.astype(jnp.float32) ** 2, axis=-1)[:, None, :]      # (B, 1, Ny)

    # Tile sizes: Nx-tiles are sublane-aligned (mult of 8), Ny-tiles are
    # lane-dense (mult of 128). Cap tiles at the (padded) problem size.
    tm = min(tm, _round_up(Nx, 8))
    tn = min(tn, _round_up(Ny, 128))
    nx_p = _round_up(Nx, tm)
    ny_p = _round_up(Ny, tn)

    if nx_p != Nx:
        x = jnp.pad(x, ((0, 0), (0, nx_p - Nx), (0, 0)))
        rx = jnp.pad(rx, ((0, 0), (0, nx_p - Nx), (0, 0)))
    if ny_p != Ny:
        y = jnp.pad(y, ((0, 0), (0, ny_p - Ny), (0, 0)))
        ry = jnp.pad(ry, ((0, 0), (0, 0), (0, ny_p - Ny)))

    grid = (B, nx_p // tm, ny_p // tn)

    in_itemsize = jnp.dtype(x.dtype).itemsize
    cost = pl.CostEstimate(
        flops=2 * B * nx_p * ny_p * D,
        transcendentals=0,
        bytes_accessed=(
            B * nx_p * ny_p * 4                       # output (dominant)
            + B * (nx_p + ny_p) * D * in_itemsize     # x, y
            + B * (nx_p + ny_p) * 4                   # rx, ry
        ),
    )

    out = pl.pallas_call(
        _pairwise_dist_kernel,
        out_shape=jax.ShapeDtypeStruct((B, nx_p, ny_p), jnp.float32),
        grid_spec=pltpu.PrefetchScalarGridSpec(
            num_scalar_prefetch=0,
            grid=grid,
            in_specs=[
                pl.BlockSpec((None, tm, D), lambda b, i, j: (b, i, 0)),
                pl.BlockSpec((None, tn, D), lambda b, i, j: (b, j, 0)),
                pl.BlockSpec((None, tm, 1), lambda b, i, j: (b, i, 0)),
                pl.BlockSpec((None, 1, tn), lambda b, i, j: (b, 0, j)),
            ],
            out_specs=pl.BlockSpec((None, tm, tn), lambda b, i, j: (b, i, j)),
        ),
        compiler_params=pltpu.CompilerParams(
            dimension_semantics=("parallel", "parallel", "parallel"),
        ),
        cost_estimate=cost,
    )(x, y, rx, ry)

    # Slice off lane/sublane padding.
    return out[:, :Nx, :Ny]


def _reference(x, y):
    # Pure-JAX mirror of the PyTorch reference for verification.
    x = x.astype(jnp.float32)
    y = y.astype(jnp.float32)
    xx = jnp.einsum("bnd,bmd->bnm", x, x)
    yy = jnp.einsum("bnd,bmd->bnm", y, y)
    zz = jnp.einsum("bnd,bmd->bnm", x, y)
    rx = jnp.diagonal(xx, axis1=1, axis2=2)[:, :, None]   # (B, Nx, 1)
    ry = jnp.diagonal(yy, axis1=1, axis2=2)[:, None, :]   # (B, 1, Ny)
    return rx + ry - 2.0 * zz


if __name__ == "__main__":
    key = jax.random.PRNGKey(0)

    # Small, module-consistent test (B, N, D) point clouds.
    kx, ky = jax.random.split(key)
    B, Nx, Ny, D = 2, 8, 16, 32
    x = jax.random.normal(kx, (B, Nx, D), dtype=jnp.float32)
    y = jax.random.normal(ky, (B, Ny, D), dtype=jnp.float32)

    P = batch_pairwise_dist(x, y)
    jax.block_until_ready(P)
    P_ref = _reference(x, y)
    assert P.shape == (B, Nx, Ny)
    assert jnp.allclose(P, P_ref, atol=1e-3, rtol=1e-4)

    # Second test: non-aligned sizes exercise the padding / multi-tile path.
    k2x, k2y = jax.random.split(jax.random.PRNGKey(1))
    B2, Nx2, Ny2, D2 = 2, 200, 300, 3
    x2 = jax.random.normal(k2x, (B2, Nx2, D2), dtype=jnp.float32)
    y2 = jax.random.normal(k2y, (B2, Ny2, D2), dtype=jnp.float32)

    P2 = batch_pairwise_dist(x2, y2)
    jax.block_until_ready(P2)
    P2_ref = _reference(x2, y2)
    assert P2.shape == (B2, Nx2, Ny2)
    assert jnp.allclose(P2, P2_ref, atol=1e-3, rtol=1e-4)

    print("KERNEL_OK")
</pallas_src>

<mosaic_0001>
module attributes {stable_mosaic.version = 11 : i64} {
  func.func @_pairwise_dist_kernel(%arg0: i32, %arg1: i32, %arg2: i32, %arg3: memref<1x8x32xf32, #tpu.memory_space<vmem>>, %arg4: memref<1x128x32xf32, #tpu.memory_space<vmem>>, %arg5: memref<1x8x1xf32, #tpu.memory_space<vmem>>, %arg6: memref<1x1x128xf32, #tpu.memory_space<vmem>>, %arg7: memref<1x8x128xf32, #tpu.memory_space<vmem>>) attributes {dimension_semantics = [#tpu.dimension_semantics<parallel>, #tpu.dimension_semantics<parallel>, #tpu.dimension_semantics<parallel>], iteration_bounds = array<i64: 2, 1, 1>, scalar_prefetch = 0 : i64, scratch_operands = 0 : i64, tpu.core_type = #tpu.core_type<tc>, window_params = [{transform_indices = @transform_0, window_bounds = array<i64: 1, 8, 32>}, {transform_indices = @transform_1, window_bounds = array<i64: 1, 128, 32>}, {transform_indices = @transform_2, window_bounds = array<i64: 1, 8, 1>}, {transform_indices = @transform_3, window_bounds = array<i64: 1, 1, 128>}, {transform_indices = @transform_4, window_bounds = array<i64: 1, 8, 128>}]} {
    %c0 = arith.constant 0 : index
    %c0_0 = arith.constant 0 : index
    %c0_1 = arith.constant 0 : index
    %0 = vector.load %arg3[%c0, %c0_0, %c0_1] : memref<1x8x32xf32, #tpu.memory_space<vmem>>, vector<1x8x32xf32>
    %1 = vector.shape_cast %0 : vector<1x8x32xf32> to vector<8x32xf32>
    %c0_2 = arith.constant 0 : index
    %c0_3 = arith.constant 0 : index
    %c0_4 = arith.constant 0 : index
    %2 = vector.load %arg4[%c0_2, %c0_3, %c0_4] : memref<1x128x32xf32, #tpu.memory_space<vmem>>, vector<1x128x32xf32>
    %3 = vector.shape_cast %2 : vector<1x128x32xf32> to vector<128x32xf32>
    %cst = arith.constant dense<0.000000e+00> : vector<8x128xf32>
    %4 = tpu.matmul %1, %3, %cst {dimension_numbers = #tpu.dot_dimension_numbers<[1], [1], [0], [0], [0, 0, 1, 0], [], []>} : vector<8x32xf32>, vector<128x32xf32>, vector<8x128xf32> -> vector<8x128xf32>
    %c0_5 = arith.constant 0 : index
    %c0_6 = arith.constant 0 : index
    %c0_7 = arith.constant 0 : index
    %5 = vector.load %arg5[%c0_5, %c0_6, %c0_7] : memref<1x8x1xf32, #tpu.memory_space<vmem>>, vector<1x8x1xf32>
    %6 = vector.shape_cast %5 : vector<1x8x1xf32> to vector<8x1xf32>
    %c0_8 = arith.constant 0 : index
    %c0_9 = arith.constant 0 : index
    %c0_10 = arith.constant 0 : index
    %7 = vector.load %arg6[%c0_8, %c0_9, %c0_10] : memref<1x1x128xf32, #tpu.memory_space<vmem>>, vector<1x1x128xf32>
    %8 = vector.shape_cast %7 : vector<1x1x128xf32> to vector<1x128xf32>
    %9 = vector.broadcast %6 : vector<8x1xf32> to vector<8x128xf32>
    %10 = vector.broadcast %8 : vector<1x128xf32> to vector<8x128xf32>
    %11 = arith.addf %9, %10 : vector<8x128xf32>
    %cst_11 = arith.constant 2.000000e+00 : f32
    %12 = vector.broadcast %cst_11 : f32 to vector<8x128xf32>
    %13 = arith.mulf %12, %4 : vector<8x128xf32>
    %14 = arith.subf %11, %13 : vector<8x128xf32>
    %c0_12 = arith.constant 0 : index
    %c0_13 = arith.constant 0 : index
    %c0_14 = arith.constant 0 : index
    %15 = vector.load %arg7[%c0_12, %c0_13, %c0_14] : memref<1x8x128xf32, #tpu.memory_space<vmem>>, vector<1x8x128xf32>
    %16 = vector.shape_cast %15 : vector<1x8x128xf32> to vector<8x128xf32>
    %17 = vector.shape_cast %14 : vector<8x128xf32> to vector<1x8x128xf32>
    tpu.vector_store %arg7[%c0_12, %c0_13, %c0_14], %17 {strides = array<i32>} : memref<1x8x128xf32, #tpu.memory_space<vmem>>, vector<1x8x128xf32>,
    return
  }
  func.func @transform_0(%arg0: i32, %arg1: i32, %arg2: i32) -> (i32, i32, i32) {
    %c0_i32 = arith.constant 0 : i32
    %c0_i32_0 = arith.constant 0 : i32
    return %arg0, %arg1, %c0_i32 : i32, i32, i32
  }
  func.func @transform_1(%arg0: i32, %arg1: i32, %arg2: i32) -> (i32, i32, i32) {
    %c0_i32 = arith.constant 0 : i32
    %c0_i32_0 = arith.constant 0 : i32
    return %arg0, %arg2, %c0_i32 : i32, i32, i32
  }
  func.func @transform_2(%arg0: i32, %arg1: i32, %arg2: i32) -> (i32, i32, i32) {
    %c0_i32 = arith.constant 0 : i32
    %c0_i32_0 = arith.constant 0 : i32
    return %arg0, %arg1, %c0_i32 : i32, i32, i32
  }
  func.func @transform_3(%arg0: i32, %arg1: i32, %arg2: i32) -> (i32, i32, i32) {
    %c0_i32 = arith.constant 0 : i32
    %c0_i32_0 = arith.constant 0 : i32
    return %arg0, %c0_i32, %arg2 : i32, i32, i32
  }
  func.func @transform_4(%arg0: i32, %arg1: i32, %arg2: i32) -> (i32, i32, i32) {
    %c0_i32 = arith.constant 0 : i32
    return %arg0, %arg1, %arg2 : i32, i32, i32
  }
}

</mosaic_0001>

<llo_original>
// kernel: tpu_custom_call.1
$region0: #{tpu_custom_call.1}
  #allocation0 [shape = 'u32[]', space=smem, size = 0x4, offset = 0x4, fixed_abs, tag = 'smem constant byte address 0x4 - core index']
  #allocation1 [shape = 'u32[144,128]{1,0:T(1,128)}', space=vmem, size = 0x12000, scoped, tag = 'internal scratch']
  %s0 = inlined_call_operand.vmem [shape: f32[2,8,32], index: 0, kind: input, shape index: {}]
  %s1 = inlined_call_operand.vmem [shape: f32[2,128,32], index: 1, kind: input, shape index: {}]
  %s2 = inlined_call_operand.vmem [shape: f32[2,8,1], index: 2, kind: input, shape index: {}]
  %s3 = inlined_call_operand.vmem [shape: f32[2,1,128], index: 3, kind: input, shape index: {}]
  %s4 = inlined_call_operand.hbm [shape: f32[2,8,128], index: 4, kind: output, shape index: {}]
  %s5 = sld [smem:[#allocation0]]
  $region49: #{tpu_custom_call.1} parent=0
    _
  %s7 = ssub.s32 1, %s5
  %s8 = scalar_select 0, %s7, %s5
  $region1: #{tpu_custom_call.1} parent=0
    #allocation2 [shape = 'u8[8192]{0}', space=vmem, size = 0x2000, scoped, tag = 'output window, operand 0']
    #allocation3 [shape = 's32[2]{0}', space=sflag, size = 0x8, scoped, tag = 'scoped memory for tpu_custom_call.1']
    %9 = vsyncpa [#allocation3], 0
    %s10 = scalar_lea.sflag [#allocation3], 1
    %11 = vsyncpa %s10, 0
    loop: start=0, step=1, limit=4
    $region2: #{tpu_custom_call.1} parent=1 // loop_pre_header
      _
    $region3: #{tpu_custom_call.1} parent=1 // loop_header
      %s13 = sphi 0, %s17
      %p14 = scmp.ge.s32.totalorder %s13, 4
      %s20 = sphi 0, %s39
      %s21 = sphi 0, %s35
      %s22 = sphi 0, %s31
      %s23 = sphi 0, %s20
      %s24 = sphi 0, %s21
      %s25 = sphi 0, %s22
      %s26 = sphi 0, %s23
      %s27 = sphi 0, %s24
      %s28 = sphi 0, %s25
      %s44 = sphi 0, %s46
      %s47 = sphi 0, %s44
      %s48 = sphi 0, %s47
      %s64 = sphi 0, %s48
      %s72 = sphi 0, %s74
      %s75 = sphi 0, %s72
      %s76 = sphi 0, %s75
      %s92 = sphi 0, %s76
      %s100 = sphi 0, %s102
      %s103 = sphi 0, %s100
      %s104 = sphi 0, %s103
      %s120 = sphi 0, %s104
      %s128 = sphi 0, %s130
      %s131 = sphi 0, %s128
      %s132 = sphi 0, %s131
      %s148 = sphi 0, %s132
      %s158 = sphi 0, %s160
      %s161 = sphi 0, %s158
      %s162 = sphi 0, %s161
      %s178 = sphi 0, %s162
    $region4: #{tpu_custom_call.1} parent=1 // loop_header_branch
      %16 = sbr.rel (%p14) target = $region8
    $region5: #{tpu_custom_call.1} parent=1 // loop_body
      %s18 = ssub.s32 %s13, 1
      %s19 = ssub.s32 %s13, 2
      %s29 = sadd.s32 1, %s22
      %p30 = scmp.ge.s32.totalorder %s29, 1
      %s31 = scalar_select %p30, 0, %s29
      %s32 = sadd.s32 1, %s21
      %s33 = scalar_select %p30, %s32, %s21
      %p34 = scmp.ge.s32.totalorder %s33, 1
      %s35 = scalar_select %p34, 0, %s33
      %s36 = sadd.s32 1, %s20
      %s37 = scalar_select %p34, %s36, %s20
      %p38 = scmp.ge.s32.totalorder %s37, 2
      %s39 = scalar_select %p38, 0, %s37
      %s40 = ssub.s32 %s20, %s39
      %s41 = ssub.s32 %s21, %s35
      %s42 = sor.u32 %s40, %s41
      %p43 = scmp.eq.s32.totalorder %s42, 0
      %s45 = sadd.s32 %s44, 1
      %s46 = scalar_select %p43, %s44, %s45
      %p49 = pneg %p43
      %p50 = scmp.eq.s32.totalorder %s13, 1
      %p51 = por %p49, %p50
      %p52 = scmp.ne.s32.totalorder %s44, %s47
      %p53 = scmp.eq.s32.totalorder %s13, 0
      %p54 = por %p52, %p53
      %p55 = scmp.ne.s32.totalorder %s44, %s47
      %p56 = scmp.eq.s32.totalorder %s18, 1
      %p57 = por %p55, %p56
      %p58 = scmp.ne.s32.totalorder %s47, %s48
      %p59 = scmp.eq.s32.totalorder %s18, 0
      %p60 = por %p58, %p59
      %p61 = scmp.ne.s32.totalorder %s47, %s48
      %p62 = scmp.eq.s32.totalorder %s19, 1
      %p63 = por %p61, %p62
      %p65 = scmp.ne.s32.totalorder %s48, %s64
      %p66 = scmp.eq.s32.totalorder %s19, 0
      %p67 = por %p65, %p66
      %s68 = ssub.s32 %s20, %s39
      %s69 = ssub.s32 %s22, %s31
      %s70 = sor.u32 %s68, %s69
      %p71 = scmp.eq.s32.totalorder %s70, 0
      %s73 = sadd.s32 %s72, 1
      %s74 = scalar_select %p71, %s72, %s73
      %p77 = pneg %p71
      %p78 = scmp.eq.s32.totalorder %s13, 1
      %p79 = por %p77, %p78
      %p80 = scmp.ne.s32.totalorder %s72, %s75
      %p81 = scmp.eq.s32.totalorder %s13, 0
      %p82 = por %p80, %p81
      %p83 = scmp.ne.s32.totalorder %s72, %s75
      %p84 = scmp.eq.s32.totalorder %s18, 1
      %p85 = por %p83, %p84
      %p86 = scmp.ne.s32.totalorder %s75, %s76
      %p87 = scmp.eq.s32.totalorder %s18, 0
      %p88 = por %p86, %p87
      %p89 = scmp.ne.s32.totalorder %s75, %s76
      %p90 = scmp.eq.s32.totalorder %s19, 1
      %p91 = por %p89, %p90
      %p93 = scmp.ne.s32.totalorder %s76, %s92
      %p94 = scmp.eq.s32.totalorder %s19, 0
      %p95 = por %p93, %p94
      %s96 = ssub.s32 %s20, %s39
      %s97 = ssub.s32 %s21, %s35
      %s98 = sor.u32 %s96, %s97
      %p99 = scmp.eq.s32.totalorder %s98, 0
      %s101 = sadd.s32 %s100, 1
      %s102 = scalar_select %p99, %s100, %s101
      %p105 = pneg %p99
      %p106 = scmp.eq.s32.totalorder %s13, 1
      %p107 = por %p105, %p106
      %p108 = scmp.ne.s32.totalorder %s100, %s103
      %p109 = scmp.eq.s32.totalorder %s13, 0
      %p110 = por %p108, %p109
      %p111 = scmp.ne.s32.totalorder %s100, %s103
      %p112 = scmp.eq.s32.totalorder %s18, 1
      %p113 = por %p111, %p112
      %p114 = scmp.ne.s32.totalorder %s103, %s104
      %p115 = scmp.eq.s32.totalorder %s18, 0
      %p116 = por %p114, %p115
      %p117 = scmp.ne.s32.totalorder %s103, %s104
      %p118 = scmp.eq.s32.totalorder %s19, 1
      %p119 = por %p117, %p118
      %p121 = scmp.ne.s32.totalorder %s104, %s120
      %p122 = scmp.eq.s32.totalorder %s19, 0
      %p123 = por %p121, %p122
      %s124 = ssub.s32 %s20, %s39
      %s125 = ssub.s32 %s22, %s31
      %s126 = sor.u32 %s124, %s125
      %p127 = scmp.eq.s32.totalorder %s126, 0
      %s129 = sadd.s32 %s128, 1
      %s130 = scalar_select %p127, %s128, %s129
      %p133 = pneg %p127
      %p134 = scmp.eq.s32.totalorder %s13, 1
      %p135 = por %p133, %p134
      %p136 = scmp.ne.s32.totalorder %s128, %s131
      %p137 = scmp.eq.s32.totalorder %s13, 0
      %p138 = por %p136, %p137
      %p139 = scmp.ne.s32.totalorder %s128, %s131
      %p140 = scmp.eq.s32.totalorder %s18, 1
      %p141 = por %p139, %p140
      %p142 = scmp.ne.s32.totalorder %s131, %s132
      %p143 = scmp.eq.s32.totalorder %s18, 0
      %p144 = por %p142, %p143
      %p145 = scmp.ne.s32.totalorder %s131, %s132
      %p146 = scmp.eq.s32.totalorder %s19, 1
      %p147 = por %p145, %p146
      %p149 = scmp.ne.s32.totalorder %s132, %s148
      %p150 = scmp.eq.s32.totalorder %s19, 0
      %p151 = por %p149, %p150
      %s152 = ssub.s32 %s20, %s39
      %s153 = ssub.s32 %s21, %s35
      %s154 = sor.u32 %s152, %s153
      %s155 = ssub.s32 %s22, %s31
      %s156 = sor.u32 %s154, %s155
      %p157 = scmp.eq.s32.totalorder %s156, 0
      %s159 = sadd.s32 %s158, 1
      %s160 = scalar_select %p157, %s158, %s159
      %p163 = pneg %p157
      %p164 = scmp.eq.s32.totalorder %s13, 1
      %p165 = por %p163, %p164
      %p166 = scmp.ne.s32.totalorder %s158, %s161
      %p167 = scmp.eq.s32.totalorder %s13, 0
      %p168 = por %p166, %p167
      %p169 = scmp.ne.s32.totalorder %s158, %s161
      %p170 = scmp.eq.s32.totalorder %s18, 1
      %p171 = por %p169, %p170
      %p172 = scmp.ne.s32.totalorder %s161, %s162
      %p173 = scmp.eq.s32.totalorder %s18, 0
      %p174 = por %p172, %p173
      %p175 = scmp.ne.s32.totalorder %s161, %s162
      %p176 = scmp.eq.s32.totalorder %s19, 1
      %p177 = por %p175, %p176
      %p179 = scmp.ne.s32.totalorder %s162, %s178
      %p180 = scmp.eq.s32.totalorder %s19, 0
      %p181 = por %p179, %p180
      %p182 = scmp.le.s32.totalorder 1, %s13
      %p183 = scmp.lt.s32.totalorder %s13, 3
      %p184 = pnand %p182, %p183
      %p185 = pneg %p184
      // Predicated region
      $region9: #{tpu_custom_call.1} parent=5 // pred_check
        _
      $region10: #{tpu_custom_call.1} parent=5 // pred_check_branch
        %187 = sbr.rel (%p184) target = $region12
      $region11: #{tpu_custom_call.1} parent=5 // pred_region
        %s188 = ssub.s32 %s13, 1
      $region12: #{tpu_custom_call.1} parent=5 // pred_fallthru
        _
      %p189 = scmp.lt.s32.totalorder %s13, 2
      // Predicated region
      $region13: #{tpu_custom_call.1} parent=5 // pred_check
        %p190 = pneg %p189
      $region14: #{tpu_custom_call.1} parent=5 // pred_check_branch
        %192 = sbr.rel (%p190) target = $region16
      $region15: #{tpu_custom_call.1} parent=5 // pred_region
        // Predicated region
        $region17: #{tpu_custom_call.1} parent=15 // pred_check
          %p193 = pneg %p54
        $region18: #{tpu_custom_call.1} parent=15 // pred_check_branch
          %195 = sbr.rel (%p193) target = $region20
        $region19: #{tpu_custom_call.1} parent=15 // pred_region
          %p196 = scmp.lt.s32.totalorder %s20, 1
          %s197 = scalar_select %p196, %s20, 1
          %p198 = scmp.lt.s32.totalorder %s21, 0
          %s199 = scalar_select %p198, %s21, 0
          %s200 = sadd.s32 %s199, %s197
          %s201 = smul.addr %s200, 8
          %s202 = scalar_lea.vmem %s0, %s201
        $region20: #{tpu_custom_call.1} parent=15 // pred_fallthru
          _
        // Predicated region
        $region21: #{tpu_custom_call.1} parent=15 // pred_check
          %p203 = pneg %p82
        $region22: #{tpu_custom_call.1} parent=15 // pred_check_branch
          %205 = sbr.rel (%p203) target = $region24
        $region23: #{tpu_custom_call.1} parent=15 // pred_region
          %s206 = smul.u32 16, %s22
          %p207 = scmp.lt.s32.totalorder %s20, 1
          %s208 = scalar_select %p207, %s20, 1
          %p209 = scmp.lt.s32.totalorder %s206, 15
          %s210 = scalar_select %p209, %s206, 15
          %s211 = smul.addr %s208, 16
          %s212 = sadd.s32 %s210, %s211
          %s213 = smul.addr %s212, 8
          %s214 = scalar_lea.vmem %s1, %s213
          %s215 = smul.u32 16, %s22
        $region24: #{tpu_custom_call.1} parent=15 // pred_fallthru
          _
        // Predicated region
        $region25: #{tpu_custom_call.1} parent=15 // pred_check
          %p216 = pneg %p110
        $region26: #{tpu_custom_call.1} parent=15 // pred_check_branch
          %218 = sbr.rel (%p216) target = $region28
        $region27: #{tpu_custom_call.1} parent=15 // pred_region
          %p219 = scmp.lt.s32.totalorder %s20, 1
          %s220 = scalar_select %p219, %s20, 1
          %p221 = scmp.lt.s32.totalorder %s21, 0
          %s222 = scalar_select %p221, %s21, 0
          %s223 = sadd.s32 %s222, %s220
          %s224 = smul.addr %s223, 8
          %s225 = scalar_lea.vmem %s2, %s224
        $region28: #{tpu_custom_call.1} parent=15 // pred_fallthru
          _
        // Predicated region
        $region29: #{tpu_custom_call.1} parent=15 // pred_check
          %p226 = pneg %p138
        $region30: #{tpu_custom_call.1} parent=15 // pred_check_branch
          %228 = sbr.rel (%p226) target = $region32
        $region31: #{tpu_custom_call.1} parent=15 // pred_region
          %p229 = scmp.lt.s32.totalorder %s20, 1
          %s230 = scalar_select %p229, %s20, 1
          %p231 = scmp.lt.s32.totalorder %s22, 0
          %s232 = scalar_select %p231, %s22, 0
          %s233 = sadd.s32 %s232, %s230
          %s234 = scalar_lea.vmem %s3, %s233
        $region32: #{tpu_custom_call.1} parent=15 // pred_fallthru
          _
      $region16: #{tpu_custom_call.1} parent=5 // pred_fallthru
        _
      %p235 = scmp.le.s32.totalorder 1, %s13
      %p236 = scmp.lt.s32.totalorder %s13, 3
      %p237 = pnand %p235, %p236
      %p238 = pneg %p237
      // Predicated region
      $region33: #{tpu_custom_call.1} parent=5 // pred_check
        _
      $region34: #{tpu_custom_call.1} parent=5 // pred_check_branch
        %240 = sbr.rel (%p237) target = $region36
      $region35: #{tpu_custom_call.1} parent=5 // pred_region
        %s241 = ssub.s32 %s13, 1
        %p242 = scmp.lt.s32.totalorder %s23, 1
        %s243 = scalar_select %p242, %s23, 1
        %p244 = scmp.lt.s32.totalorder %s24, 0
        %s245 = scalar_select %p244, %s24, 0
        %s246 = sadd.s32 %s245, %s243
        %s247 = smul.addr %s246, 8
        %s248 = scalar_lea.vmem %s0, %s247
        %p249 = pneg %p60
        %p250 = pneg %p57
        %s251 = smul.u32 16, %s25
        %p252 = scmp.lt.s32.totalorder %s23, 1
        %s253 = scalar_select %p252, %s23, 1
        %p254 = scmp.lt.s32.totalorder %s251, 15
        %s255 = scalar_select %p254, %s251, 15
        %s256 = smul.addr %s253, 16
        %s257 = sadd.s32 %s255, %s256
        %s258 = smul.addr %s257, 8
        %s259 = scalar_lea.vmem %s1, %s258
        %p260 = pneg %p88
        %p261 = pneg %p85
        %p262 = scmp.lt.s32.totalorder %s23, 1
        %s263 = scalar_select %p262, %s23, 1
        %p264 = scmp.lt.s32.totalorder %s24, 0
        %s265 = scalar_select %p264, %s24, 0
        %s266 = sadd.s32 %s265, %s263
        %s267 = smul.addr %s266, 8
        %s268 = scalar_lea.vmem %s2, %s267
        %p269 = pneg %p116
        %p270 = pneg %p113
        %p271 = scmp.lt.s32.totalorder %s23, 1
        %s272 = scalar_select %p271, %s23, 1
        %p273 = scmp.lt.s32.totalorder %s25, 0
        %s274 = scalar_select %p273, %s25, 0
        %s275 = sadd.s32 %s274, %s272
        %s276 = scalar_lea.vmem %s3, %s275
        %p277 = pneg %p144
        %p278 = pneg %p141
        %p279 = pneg %p174
        %p280 = pneg %p171
        %s281 = sand.u32 %s161, 1
        %s282 = scalar_lea.sflag [#allocation3], %s281
        %s283 = sand.u32 %s161, 1
        %s284 = smul.addr %s283, 8
        %s285 = scalar_lea.vmem [#allocation2], %s284
        %p286 = scmp.lt.s32.totalorder %s23, 1
        %s287 = scalar_select %p286, %s23, 1
        %p288 = scmp.lt.s32.totalorder %s24, 0
        %s289 = scalar_select %p288, %s24, 0
        %s290 = sadd.s32 %s289, %s287
        %s291 = smul.addr %s290, 8
        %s292 = scalar_lea.vmem %s0, %s291
        %s293 = smul.u32 16, %s25
        %p294 = scmp.lt.s32.totalorder %s23, 1
        %s295 = scalar_select %p294, %s23, 1
        %p296 = scmp.lt.s32.totalorder %s293, 15
        %s297 = scalar_select %p296, %s293, 15
        %s298 = smul.addr %s295, 16
        %s299 = sadd.s32 %s297, %s298
        %s300 = smul.addr %s299, 8
        %s301 = scalar_lea.vmem %s1, %s300
        %s302 = smul.u32 16, %s25
        %p303 = scmp.lt.s32.totalorder %s23, 1
        %s304 = scalar_select %p303, %s23, 1
        %p305 = scmp.lt.s32.totalorder %s24, 0
        %s306 = scalar_select %p305, %s24, 0
        %s307 = sadd.s32 %s306, %s304
        %s308 = smul.addr %s307, 8
        %s309 = scalar_lea.vmem %s2, %s308
        %p310 = scmp.lt.s32.totalorder %s23, 1
        %s311 = scalar_select %p310, %s23, 1
        %p312 = scmp.lt.s32.totalorder %s25, 0
        %s313 = scalar_select %p312, %s25, 0
        %s314 = sadd.s32 %s313, %s311
        %s315 = scalar_lea.vmem %s3, %s314
        %v316 = vld [vmem:[%s292] sm:$0xff]
        %v317 = vld [vmem:[%s301] sm:$0xff]
        %v318 = vld [vmem:[%s301 + $0x8] sm:$0xff]
        %v319 = vld [vmem:[%s301 + $0x10] sm:$0xff]
        %v320 = vld [vmem:[%s301 + $0x18] sm:$0xff]
        %v321 = vld [vmem:[%s301 + $0x20] sm:$0xff]
        %v322 = vld [vmem:[%s301 + $0x28] sm:$0xff]
        %v323 = vld [vmem:[%s301 + $0x30] sm:$0xff]
        %v324 = vld [vmem:[%s301 + $0x38] sm:$0xff]
        %v325 = vld [vmem:[%s301 + $0x40] sm:$0xff]
        %v326 = vld [vmem:[%s301 + $0x48] sm:$0xff]
        %v327 = vld [vmem:[%s301 + $0x50] sm:$0xff]
        %v328 = vld [vmem:[%s301 + $0x58] sm:$0xff]
        %v329 = vld [vmem:[%s301 + $0x60] sm:$0xff]
        %v330 = vld [vmem:[%s301 + $0x68] sm:$0xff]
        %v331 = vld [vmem:[%s301 + $0x70] sm:$0xff]
        %v332 = vld [vmem:[%s301 + $0x78] sm:$0xff]
        %vm333 = vcmask 261120
        %v335 = vsel %vm333, %v316, 0
        %v338 = vsel %vm333, %v317, 0
        %v341 = vsel %vm333, %v318, 0
        %v344 = vsel %vm333, %v319, 0
        %v347 = vsel %vm333, %v320, 0
        %v350 = vsel %vm333, %v321, 0
        %v353 = vsel %vm333, %v322, 0
        %v356 = vsel %vm333, %v323, 0
        %v359 = vsel %vm333, %v324, 0
        %v362 = vsel %vm333, %v325, 0
        %v365 = vsel %vm333, %v326, 0
        %v368 = vsel %vm333, %v327, 0
        %v371 = vsel %vm333, %v328, 0
        %v374 = vsel %vm333, %v329, 0
        %v377 = vsel %vm333, %v330, 0
        %v380 = vsel %vm333, %v331, 0
        %v383 = vsel %vm333, %v332, 0
        %385 = vmatprep.subr.mxu0 0.0
        %386 = vmatpush1.xpose.msra.mxu0 %v338
        %387 = vmatprep.subr.mxu0 0.0
        %388 = vmatpush1.xpose.msra.mxu0 %v341
        %389 = vmatprep.subr.mxu0 0.0
        %390 = vmatpush1.xpose.msra.mxu0 %v344
        %391 = vmatprep.subr.mxu0 0.0
        %392 = vmatpush1.xpose.msra.mxu0 %v347
        %393 = vmatprep.subr.mxu0 0.0
        %394 = vmatpush1.xpose.msra.mxu0 %v350
        %395 = vmatprep.subr.mxu0 0.0
        %396 = vmatpush1.xpose.msra.mxu0 %v353
        %397 = vmatprep.subr.mxu0 0.0
        %398 = vmatpush1.xpose.msra.mxu0 %v356
        %399 = vmatprep.subr.mxu0 0.0
        %400 = vmatpush1.xpose.msra.mxu0 %v359
        %401 = vmatprep.subr.mxu0 0.0
        %402 = vmatpush1.xpose.msra.mxu0 %v362
        %403 = vmatprep.subr.mxu0 0.0
        %404 = vmatpush1.xpose.msra.mxu0 %v365
        %405 = vmatprep.subr.mxu0 0.0
        %406 = vmatpush1.xpose.msra.mxu0 %v368
        %407 = vmatprep.subr.mxu0 0.0
        %408 = vmatpush1.xpose.msra.mxu0 %v371
        %409 = vmatprep.subr.mxu0 0.0
        %410 = vmatpush1.xpose.msra.mxu0 %v374
        %411 = vmatprep.subr.mxu0 0.0
        %412 = vmatpush1.xpose.msra.mxu0 %v377
        %413 = vmatprep.subr.mxu0 0.0
        %414 = vmatpush1.xpose.msra.mxu0 %v380
        %415 = vmatprep.subr.mxu0 0.0
        %416 = vmatpush1.xpose.msra.mxu0 %v383
        %417 = vmatprep.subr.mxu0 0.0
        %418 = vmatpush1.xpose.msra.mxu0 0.0
        %419 = vmatprep.subr.mxu0 0.0
        %420 = vmatpush1.xpose.msra.mxu0 0.0
        %421 = vmatprep.subr.mxu0 0.0
        %422 = vmatpush1.xpose.msra.mxu0 0.0
        %423 = vmatprep.subr.mxu0 0.0
        %424 = vmatpush1.xpose.msra.mxu0 0.0
        %425 = vmatprep.subr.mxu0 0.0
        %426 = vmatpush1.xpose.msra.mxu0 0.0
        %427 = vmatprep.subr.mxu0 0.0
        %428 = vmatpush1.xpose.msra.mxu0 0.0
        %429 = vmatprep.subr.mxu0 0.0
        %430 = vmatpush1.xpose.msra.mxu0 0.0
        %431 = vmatprep.subr.mxu0 0.0
        %432 = vmatpush1.xpose.msra.mxu0 0.0
        %433 = vmatprep.subr.mxu0 0.0
        %434 = vmatpush1.xpose.msra.mxu0 0.0
        %435 = vmatprep.subr.mxu0 0.0
        %436 = vmatpush1.xpose.msra.mxu0 0.0
        %437 = vmatprep.subr.mxu0 0.0
        %438 = vmatpush1.xpose.msra.mxu0 0.0
        %439 = vmatprep.subr.mxu0 0.0
        %440 = vmatpush1.xpose.msra.mxu0 0.0
        %441 = vmatprep.subr.mxu0 0.0
        %442 = vmatpush1.xpose.msra.mxu0 0.0
        %443 = vmatprep.subr.mxu0 0.0
        %444 = vmatpush1.xpose.msra.mxu0 0.0
        %445 = vmatprep.subr.mxu0 0.0
        %446 = vmatpush1.xpose.msra.mxu0 0.0
        %447 = vmatprep.subr.mxu0 0.0
        %448 = vmatpush1.xpose.msra.mxu0 0.0
        %449 = vmatprep.mubr.f32.mxu0 0.0
        %450 = vmatmul.mubr.f32.gmra.mrb[0].mxu0 %v335
        %v451 = vpop.f32.mrb[0].mxu0
        %v452 = vadd.f32 0.0, %v451
        %v453 = vpop.f32.mrb[0].mxu0
        %454 = vdwg.mxu0
        %v455 = vld [vmem:[%s309] sm:$0xff]
        %v456 = vld [vmem:[%s315] sm:$0x1]
        %458 = vset.pattern.permute.xlu0 0
        %459 = vperm.xlu0 %458, %v455
        %v460 = vpop.permute.xlu0 %459
        %v463 = vlaneseq
        %v464 = vshrl.u32 %v463, 7
        %v465 = vsub.s32 0, %v464
        %v466 = vrot.slane %v456, %v465
        %v468 = vadd.f32 %v460, %v466
        %v469 = vmul.f32 %v452, 2.0
        %v470 = vsub.f32 %v468, %v469
        %471 = vst [vmem:[%s285] sm:$0xff] %v470
        %s472 = sand.u32 %s161, 1
        %s473 = scalar_lea.sflag [#allocation3], %s472
        %s474 = sand.u32 %s161, 1
        %s475 = smul.addr %s474, 8
        %s476 = scalar_lea.vmem [#allocation2], %s475
        // Predicated region
        $region37: #{tpu_custom_call.1} parent=35 // pred_check
          %p477 = pneg %p171
        $region38: #{tpu_custom_call.1} parent=35 // pred_check_branch
          %479 = sbr.rel (%p477) target = $region40
        $region39: #{tpu_custom_call.1} parent=35 // pred_region
          %s481 = ssub.s32 128, 128
          %482 = vsyncadd %s473, %s481
          %s483 = sadd.s32 %s25, %s24
          %s484 = sadd.s32 %s483, %s23
          %s485 = smul.addr %s484, 128
          %s486 = scalar_lea.hbm %s4, %s485
          %s488 = sshll.u32 %s476, 4
          %s489 = int_to_ptr.vmem [resolvable:$true] %s488
          %491 = dma.vmem_to_hbm [thread:$0]  %s489, 128, %s486, %s473
        $region40: #{tpu_custom_call.1} parent=35 // pred_fallthru
          _
      $region36: #{tpu_custom_call.1} parent=5 // pred_fallthru
        _
      %p492 = scmp.le.s32.totalorder 2, %s13
      // Predicated region
      $region41: #{tpu_custom_call.1} parent=5 // pred_check
        %p493 = pneg %p492
      $region42: #{tpu_custom_call.1} parent=5 // pred_check_branch
        %495 = sbr.rel (%p493) target = $region44
      $region43: #{tpu_custom_call.1} parent=5 // pred_region
        %s496 = ssub.s32 %s13, 2
        // Predicated region
        $region45: #{tpu_custom_call.1} parent=43 // pred_check
          %p497 = pneg %p177
        $region46: #{tpu_custom_call.1} parent=43 // pred_check_branch
          %499 = sbr.rel (%p497) target = $region48
        $region47: #{tpu_custom_call.1} parent=43 // pred_region
          %s500 = sand.u32 %s162, 1
          %s501 = scalar_lea.sflag [#allocation3], %s500
          %s502 = sand.u32 %s162, 1
          %s503 = smul.addr %s502, 8
          %s504 = scalar_lea.vmem [#allocation2], %s503
          %505 = dma.done %s501, 128
        $region48: #{tpu_custom_call.1} parent=43 // pred_fallthru
          _
      $region44: #{tpu_custom_call.1} parent=5 // pred_fallthru
        _
    $region6: #{tpu_custom_call.1} parent=1 // loop_footer
      %s17 = sadd.s32 1, %s13
    $region7: #{tpu_custom_call.1} parent=1 // loop_footer_branch
      %12 = sbr.rel target = $region3
    $region8: #{tpu_custom_call.1} parent=1 // loop_exit
      _
    %506 = vsyncpa [#allocation3], 1
    %s507 = scalar_lea.sflag [#allocation3], 1
    %508 = vsyncpa %s507, 1

</llo_original>
